<compile_context>
chip_gen: v5e
topology: v5e:2x2
jax: 0.10.0
libtpu: 0.0.40
codegen_flags: <defaults>
</compile_context>

<pallas_src>
import jax
import jax.numpy as jnp
from jax.experimental import pallas as pl
from jax.experimental.pallas import tpu as pltpu


# ---------------------------------------------------------------------------
# Kernel
# ---------------------------------------------------------------------------
def _linear_kernel(x_ref, w_ref, b_ref, o_ref):
    # x_ref: (tm, tk) bf16   w_ref: (tk, tn) bf16   b_ref: (1, tn) f32
    # o_ref: (tm, tn) f32 -- block index is K-invariant, so the output tile
    # stays resident in VMEM across the K axis and serves as the accumulator.
    @pl.when(pl.program_id(2) == 0)
    def _():
        o_ref[...] = jnp.broadcast_to(b_ref[...], o_ref.shape)

    # MXU-canonical [tm,tk] x [tk,tn] matmul, bf16 operands, f32 accumulate.
    o_ref[...] += jnp.dot(
        x_ref[...], w_ref[...], preferred_element_type=jnp.float32
    )


# ---------------------------------------------------------------------------
# Tiling / prepacking helpers
# ---------------------------------------------------------------------------
def _round_up(v, m):
    return ((v + m - 1) // m) * m


def choose_tiles(B, N, K, *, tm=512, tn=1024, tk=2048):
    """Clamp default tiles to the problem, keeping bf16/f32 layout legality.

    Sublane dims touching bf16 tiles are rounded to 16; lane dims to 128.
    Defaults (~16 MiB live with double-buffering) fit v7x's 64 MiB VMEM and
    are 256-aligned for the v6e/v7x MXU; small problems clamp down.
    """
    tm = min(tm, _round_up(B, 16))     # sublane of bf16 x tile and f32 out tile
    tn = min(tn, _round_up(N, 128))    # lane dim of W / out / bias
    tk = min(tk, _round_up(K, 128))    # lane of x, sublane of W (bf16 -> 16 ok)

    Mp, Np, Kp = _round_up(B, tm), _round_up(N, tn), _round_up(K, tk)

    # v7x shards the "parallel" grid axes across its 2 TensorCores; avoid a
    # degenerate 1x1 parallel grid when the problem is big enough to split.
    if (Mp // tm) * (Np // tn) == 1:
        if Np % 256 == 0 and Np // 128 >= 2:
            tn = Np // 2
        elif Mp % 32 == 0 and Mp // 16 >= 2:
            tm = Mp // 2

    return tm, tn, tk, Mp, Np, Kp


def prepack_linear_params(weight, bias, *, Np, Kp, w_dtype=jnp.bfloat16):
    """One-time prepack: W[N,K] -> bf16 W^T padded to [Kp, Np]; bias -> [1, Np].

    Weights are constant, so the transpose / cast / pad is paid once here
    instead of on every forward call.
    """
    N, K = weight.shape
    wt = weight.T.astype(w_dtype)
    if (Kp, Np) != (K, N):
        wt = jnp.pad(wt, ((0, Kp - K), (0, Np - N)))
    bp = bias.astype(jnp.float32)
    if Np != N:
        bp = jnp.pad(bp, (0, Np - N))
    return wt, bp.reshape(1, Np)


# ---------------------------------------------------------------------------
# Forward pass
# ---------------------------------------------------------------------------
def linear_forward_packed(x, w_packed, b_packed, *, tm, tn, tk, out_features):
    """y = x @ W^T + b given a prepacked [Kp, Np] bf16 weight."""
    B, K = x.shape
    Kp, Np = w_packed.shape
    Mp = _round_up(B, tm)

    xp = x.astype(jnp.bfloat16)
    if (Mp, Kp) != (B, K):
        # K zero-padding contributes 0 to the contraction; M padding is
        # sliced off below. Skipped entirely when already aligned.
        xp = jnp.pad(xp, ((0, Mp - B), (0, Kp - K)))

    grid = (Mp // tm, Np // tn, Kp // tk)

    flops = 2 * B * K * out_features
    bytes_accessed = 2 * B * K + 2 * Kp * Np + 4 * Mp * Np + 4 * Np

    out_padded = pl.pallas_call(
        _linear_kernel,
        out_shape=jax.ShapeDtypeStruct((Mp, Np), jnp.float32),
        grid_spec=pltpu.PrefetchScalarGridSpec(
            num_scalar_prefetch=0,
            grid=grid,
            in_specs=[
                pl.BlockSpec((tm, tk), lambda i, j, k: (i, k)),   # x tile (bf16)
                pl.BlockSpec((tk, tn), lambda i, j, k: (k, j)),   # W^T tile (bf16)
                pl.BlockSpec((1, tn), lambda i, j, k: (0, j)),    # bias row (f32)
            ],
            out_specs=pl.BlockSpec((tm, tn), lambda i, j, k: (i, j)),
        ),
        compiler_params=pltpu.CompilerParams(
            dimension_semantics=("parallel", "parallel", "arbitrary"),
            vmem_limit_bytes=48 * 1024 * 1024,
        ),
        cost_estimate=pl.CostEstimate(
            flops=flops, bytes_accessed=bytes_accessed, transcendentals=0
        ),
    )(xp, w_packed, b_packed)

    return out_padded[:B, :out_features]


def linear_forward(x, weight, bias):
    """Convenience wrapper: choose tiles + prepack + run (PyTorch nn.Linear)."""
    B, K = x.shape
    N, Kw = weight.shape
    assert K == Kw, "weight inner dim must match x features"
    tm, tn, tk, Mp, Np, Kp = choose_tiles(B, N, K)
    w_packed, b_packed = prepack_linear_params(weight, bias, Np=Np, Kp=Kp)
    return linear_forward_packed(
        x, w_packed, b_packed, tm=tm, tn=tn, tk=tk, out_features=N
    )


def init_linear_params(key, input_size, output_size, dtype=jnp.float32):
    # Deterministic init mimicking nn.Linear default: U(-1/sqrt(in), 1/sqrt(in)).
    kw, kb = jax.random.split(key)
    bound = 1.0 / jnp.sqrt(jnp.array(input_size, dtype=jnp.float32))
    weight = jax.random.uniform(
        kw, (output_size, input_size), dtype=dtype, minval=-bound, maxval=bound
    )
    bias = jax.random.uniform(
        kb, (output_size,), dtype=dtype, minval=-bound, maxval=bound
    )
    return weight, bias


if __name__ == "__main__":
    # NOTE: at these toy sizes (2x2x2) plain XLA `x @ W.T + b` would beat any
    # Pallas kernel; the kernel is exercised here purely for correctness.
    key = jax.random.PRNGKey(0)
    k_param, k_x = jax.random.split(key)

    input_size, output_size = 2, 2   # linear_regression(2, 2)
    batch = 2

    weight, bias = init_linear_params(k_param, input_size, output_size)
    x = jax.random.normal(k_x, (batch, input_size), dtype=jnp.float32)

    yhat = linear_forward(x, weight, bias)
    yhat = jax.block_until_ready(yhat)

    # Reference check in plain JAX (looser tolerance: bf16 MXU operands).
    ref = x @ weight.T + bias
    assert yhat.shape == (batch, output_size)
    assert jnp.allclose(yhat, ref, atol=1e-2, rtol=1e-2)

    print("KERNEL_OK")
</pallas_src>

<mosaic_0001>
module attributes {stable_mosaic.version = 11 : i64} {
  func.func @_linear_kernel(%arg0: i32, %arg1: i32, %arg2: i32, %arg3: memref<16x128xbf16, #tpu.memory_space<vmem>>, %arg4: memref<128x128xbf16, #tpu.memory_space<vmem>>, %arg5: memref<1x128xf32, #tpu.memory_space<vmem>>, %arg6: memref<16x128xf32, #tpu.memory_space<vmem>>) attributes {dimension_semantics = [#tpu.dimension_semantics<parallel>, #tpu.dimension_semantics<parallel>, #tpu.dimension_semantics<arbitrary>], iteration_bounds = array<i64: 1, 1, 1>, scalar_prefetch = 0 : i64, scratch_operands = 0 : i64, tpu.core_type = #tpu.core_type<tc>, window_params = [{transform_indices = @transform_0, window_bounds = array<i64: 16, 128>}, {transform_indices = @transform_1, window_bounds = array<i64: 128, 128>}, {transform_indices = @transform_2, window_bounds = array<i64: 1, 128>}, {transform_indices = @transform_3, window_bounds = array<i64: 16, 128>}]} {
    %c0_i32 = arith.constant 0 : i32
    %0 = arith.cmpi eq, %arg2, %c0_i32 : i32
    %1 = arith.extui %0 : i1 to i32
    %c0_i32_0 = arith.constant 0 : i32
    %2 = arith.cmpi ne, %1, %c0_i32_0 : i32
    scf.if %2 {
      %c0_8 = arith.constant 0 : index
      %c0_9 = arith.constant 0 : index
      %9 = vector.load %arg5[%c0_8, %c0_9] : memref<1x128xf32, #tpu.memory_space<vmem>>, vector<1x128xf32>
      %10 = vector.shape_cast %9 : vector<1x128xf32> to vector<1x128xf32>
      %11 = vector.broadcast %10 : vector<1x128xf32> to vector<16x128xf32>
      %c0_10 = arith.constant 0 : index
      %c0_11 = arith.constant 0 : index
      %12 = vector.load %arg6[%c0_10, %c0_11] : memref<16x128xf32, #tpu.memory_space<vmem>>, vector<16x128xf32>
      tpu.vector_store %arg6[%c0_10, %c0_11], %11 {strides = array<i32>} : memref<16x128xf32, #tpu.memory_space<vmem>>, vector<16x128xf32>,
    } else {
    }
    %c0 = arith.constant 0 : index
    %c0_1 = arith.constant 0 : index
    %3 = vector.load %arg6[%c0, %c0_1] : memref<16x128xf32, #tpu.memory_space<vmem>>, vector<16x128xf32>
    %c0_2 = arith.constant 0 : index
    %c0_3 = arith.constant 0 : index
    %4 = vector.load %arg3[%c0_2, %c0_3] : memref<16x128xbf16, #tpu.memory_space<vmem>>, vector<16x128xbf16>
    %c0_4 = arith.constant 0 : index
    %c0_5 = arith.constant 0 : index
    %5 = vector.load %arg4[%c0_4, %c0_5] : memref<128x128xbf16, #tpu.memory_space<vmem>>, vector<128x128xbf16>
    %cst = arith.constant dense<0.000000e+00> : vector<16x128xf32>
    %6 = tpu.matmul %4, %5, %cst {dimension_numbers = #tpu.dot_dimension_numbers<[1], [0], [0], [1], [0, 0, 1, 1], [], []>} : vector<16x128xbf16>, vector<128x128xbf16>, vector<16x128xf32> -> vector<16x128xf32>
    %7 = arith.addf %3, %6 : vector<16x128xf32>
    %c0_6 = arith.constant 0 : index
    %c0_7 = arith.constant 0 : index
    %8 = vector.load %arg6[%c0_6, %c0_7] : memref<16x128xf32, #tpu.memory_space<vmem>>, vector<16x128xf32>
    tpu.vector_store %arg6[%c0_6, %c0_7], %7 {strides = array<i32>} : memref<16x128xf32, #tpu.memory_space<vmem>>, vector<16x128xf32>,
    return
  }
  func.func @transform_0(%arg0: i32, %arg1: i32, %arg2: i32) -> (i32, i32) {
    %c0_i32 = arith.constant 0 : i32
    return %arg0, %arg2 : i32, i32
  }
  func.func @transform_1(%arg0: i32, %arg1: i32, %arg2: i32) -> (i32, i32) {
    %c0_i32 = arith.constant 0 : i32
    return %arg2, %arg1 : i32, i32
  }
  func.func @transform_2(%arg0: i32, %arg1: i32, %arg2: i32) -> (i32, i32) {
    %c0_i32 = arith.constant 0 : i32
    %c0_i32_0 = arith.constant 0 : i32
    return %c0_i32, %arg1 : i32, i32
  }
  func.func @transform_3(%arg0: i32, %arg1: i32, %arg2: i32) -> (i32, i32) {
    %c0_i32 = arith.constant 0 : i32
    return %arg0, %arg1 : i32, i32
  }
}

</mosaic_0001>

<llo_original>
// kernel: tpu_custom_call.1
$region0: #{tpu_custom_call.1}
  #allocation0 [shape = 'u32[]', space=smem, size = 0x4, offset = 0x4, fixed_abs, tag = 'smem constant byte address 0x4 - core index']
  #allocation1 [shape = 'u32[72,128]{1,0:T(1,128)}', space=vmem, size = 0x9000, scoped, tag = 'internal scratch']
  %s0 = inlined_call_operand.hbm [shape: bf16[16,128], index: 0, kind: input, shape index: {}]
  %s1 = inlined_call_operand.hbm [shape: bf16[128,128], index: 1, kind: input, shape index: {}]
  %s2 = inlined_call_operand.vmem [shape: f32[1,128], index: 2, kind: input, shape index: {}]
  %s3 = inlined_call_operand.hbm [shape: f32[16,128], index: 3, kind: output, shape index: {}]
  %s4 = sld [smem:[#allocation0]]
  $region34: #{tpu_custom_call.1} parent=0
    _
  %s6 = ssub.s32 1, %s4
  %s7 = scalar_select 0, %s6, %s4
  $region1: #{tpu_custom_call.1} parent=0
    #allocation2 [shape = 'u8[4096]{0}', space=vmem, size = 0x1000, scoped, tag = 'input window, operand 0, single buffered']
    #allocation3 [shape = 's32[1]{0}', space=sflag, size = 0x4, scoped, tag = 'scoped memory for tpu_custom_call.1']
    #allocation4 [shape = 's32[1]{0}', space=sflag, size = 0x4, scoped, tag = 'scoped memory for tpu_custom_call.1']
    #allocation5 [shape = 'u8[32768]{0}', space=vmem, size = 0x8000, scoped, tag = 'input window, operand 1, single buffered']
    #allocation6 [shape = 's32[1]{0}', space=sflag, size = 0x4, scoped, tag = 'scoped memory for tpu_custom_call.1']
    #allocation7 [shape = 'u8[8192]{0}', space=vmem, size = 0x2000, scoped, tag = 'output window, operand 0, single buffered']
    %8 = vsyncpa [#allocation3], 0
    %9 = vsyncpa [#allocation6], 0
    %10 = vsyncpa [#allocation4], 0
    // Predicated region
    $region2: #{tpu_custom_call.1} parent=1 // pred_check
      _
    $region3: #{tpu_custom_call.1} parent=1 // pred_check_branch
      %12 = sbr.rel (0) target = $region5
    $region4: #{tpu_custom_call.1} parent=1 // pred_region
      %14 = vsyncadd [#allocation3], 0
      %s15 = sshll.u32 %s0, 4
      %s16 = int_to_ptr.hbm [resolvable:$true] %s15
      %s17 = sshll.u32 [#allocation2], 4
      %s18 = int_to_ptr.vmem [resolvable:$true] %s17
      %23 = dma.hbm_to_vmem [thread:$0]  %s16, 128, %s18, [#allocation3], 64, 64, 4
    $region5: #{tpu_custom_call.1} parent=1 // pred_fallthru
      _
    // Predicated region
    $region6: #{tpu_custom_call.1} parent=1 // pred_check
      _
    $region7: #{tpu_custom_call.1} parent=1 // pred_check_branch
      %25 = sbr.rel (0) target = $region9
    $region8: #{tpu_custom_call.1} parent=1 // pred_region
      %27 = vsyncadd [#allocation6], 0
      %s28 = sshll.u32 %s1, 4
      %s29 = int_to_ptr.hbm [resolvable:$true] %s28
      %s30 = sshll.u32 [#allocation5], 4
      %s31 = int_to_ptr.vmem [resolvable:$true] %s30
      %36 = dma.hbm_to_vmem [thread:$0]  %s29, 1024, %s31, [#allocation6], 64, 64, 4
    $region9: #{tpu_custom_call.1} parent=1 // pred_fallthru
      _
    // Predicated region
    $region10: #{tpu_custom_call.1} parent=1 // pred_check
      _
    $region11: #{tpu_custom_call.1} parent=1 // pred_check_branch
      %38 = sbr.rel (0) target = $region13
    $region12: #{tpu_custom_call.1} parent=1 // pred_region
      _
    $region13: #{tpu_custom_call.1} parent=1 // pred_fallthru
      _
    // Predicated region
    $region14: #{tpu_custom_call.1} parent=1 // pred_check
      _
    $region15: #{tpu_custom_call.1} parent=1 // pred_check_branch
      %40 = sbr.rel (0) target = $region17
    $region16: #{tpu_custom_call.1} parent=1 // pred_region
      %42 = dma.done [#allocation3], 128
    $region17: #{tpu_custom_call.1} parent=1 // pred_fallthru
      _
    // Predicated region
    $region18: #{tpu_custom_call.1} parent=1 // pred_check
      _
    $region19: #{tpu_custom_call.1} parent=1 // pred_check_branch
      %44 = sbr.rel (0) target = $region21
    $region20: #{tpu_custom_call.1} parent=1 // pred_region
      %46 = dma.done [#allocation6], 1024
    $region21: #{tpu_custom_call.1} parent=1 // pred_fallthru
      _
    %p47 = scmp.eq.s32.totalorder 0, 0
    // Predicated region
    $region22: #{tpu_custom_call.1} parent=1 // pred_check
      %p48 = pneg %p47
    $region23: #{tpu_custom_call.1} parent=1 // pred_check_branch
      %50 = sbr.rel (%p48) target = $region25
    $region24: #{tpu_custom_call.1} parent=1 // pred_region
      %v51 = vld [vmem:[%s2] sm:$0x1]
      %v53 = vperm.slane %v51, 0
      %55 = vst [vmem:[#allocation7] sm:$0xff] %v53
      %56 = vst [vmem:[#allocation7 + $0x8] sm:$0xff] %v53
    $region25: #{tpu_custom_call.1} parent=1 // pred_fallthru
      _
    %v57 = vld [vmem:[#allocation7] sm:$0xff]
    %v58 = vld [vmem:[#allocation7 + $0x8] sm:$0xff]
    %v59 = vld [vmem:[#allocation2] sm:$0xf]
    %v60 = vld [vmem:[#allocation2 + $0x4] sm:$0xf]
    %v61 = vld [vmem:[#allocation5] sm:$0xf]
    %v62 = vld [vmem:[#allocation5 + $0x4] sm:$0xf]
    %v63 = vld [vmem:[#allocation5 + $0x8] sm:$0xf]
    %v64 = vld [vmem:[#allocation5 + $0xc] sm:$0xf]
    %v65 = vld [vmem:[#allocation5 + $0x10] sm:$0xf]
    %v66 = vld [vmem:[#allocation5 + $0x14] sm:$0xf]
    %v67 = vld [vmem:[#allocation5 + $0x18] sm:$0xf]
    %v68 = vld [vmem:[#allocation5 + $0x1c] sm:$0xf]
    %v69 = vld [vmem:[#allocation5 + $0x20] sm:$0xf]
    %v70 = vld [vmem:[#allocation5 + $0x24] sm:$0xf]
    %v71 = vld [vmem:[#allocation5 + $0x28] sm:$0xf]
    %v72 = vld [vmem:[#allocation5 + $0x2c] sm:$0xf]
    %v73 = vld [vmem:[#allocation5 + $0x30] sm:$0xf]
    %v74 = vld [vmem:[#allocation5 + $0x34] sm:$0xf]
    %v75 = vld [vmem:[#allocation5 + $0x38] sm:$0xf]
    %v76 = vld [vmem:[#allocation5 + $0x3c] sm:$0xf]
    %v79 = vunpack.c.l.b16 %v59
    %v80 = vunpack.c.l.b16 %v60
    %v81 = vpack.c.b16 %v80, %v79
    %v99 = vunpack.c.l.b16 %v61
    %v100 = vunpack.c.l.b16 %v62
    %v101 = vunpack.c.l.b16 %v63
    %v102 = vunpack.c.l.b16 %v64
    %v103 = vunpack.c.l.b16 %v65
    %v104 = vunpack.c.l.b16 %v66
    %v105 = vunpack.c.l.b16 %v67
    %v106 = vunpack.c.l.b16 %v68
    %v107 = vunpack.c.l.b16 %v69
    %v108 = vunpack.c.l.b16 %v70
    %v109 = vunpack.c.l.b16 %v71
    %v110 = vunpack.c.l.b16 %v72
    %v111 = vunpack.c.l.b16 %v73
    %v112 = vunpack.c.l.b16 %v74
    %v113 = vunpack.c.l.b16 %v75
    %v114 = vunpack.c.l.b16 %v76
    %v115 = vpack.c.b16 %v100, %v99
    %v116 = vpack.c.b16 %v102, %v101
    %v117 = vpack.c.b16 %v104, %v103
    %v118 = vpack.c.b16 %v106, %v105
    %v119 = vpack.c.b16 %v108, %v107
    %v120 = vpack.c.b16 %v110, %v109
    %v121 = vpack.c.b16 %v112, %v111
    %v122 = vpack.c.b16 %v114, %v113
    %131 = vmatpush.bf16.msra.mxu0 %v122
    %132 = vmatpush.bf16.msra.mxu0 %v121
    %133 = vmatpush.bf16.msra.mxu0 %v120
    %134 = vmatpush.bf16.msra.mxu0 %v119
    %135 = vmatpush.bf16.msra.mxu0 %v118
    %136 = vmatpush.bf16.msra.mxu0 %v117
    %137 = vmatpush.bf16.msra.mxu0 %v116
    %138 = vmatpush.bf16.msra.mxu0 %v115
    %139 = vmatmul.bf16.gmra.mxu0 %v81
    %v140 = vpop.f32.mrf.mxu0
    %v141 = vadd.f32 0.0, %v140
    %v142 = vpop.f32.mrf.mxu0
    %v143 = vadd.f32 0.0, %v142
    %144 = vdwg.mxu0
    %v145 = vadd.f32 %v57, %v141
    %v146 = vadd.f32 %v58, %v143
    %147 = vst [vmem:[#allocation7] sm:$0xff] %v145
    %148 = vst [vmem:[#allocation7 + $0x8] sm:$0xff] %v146
    // Predicated region
    $region26: #{tpu_custom_call.1} parent=1 // pred_check
      _
    $region27: #{tpu_custom_call.1} parent=1 // pred_check_branch
      %150 = sbr.rel (0) target = $region29
    $region28: #{tpu_custom_call.1} parent=1 // pred_region
      %152 = vsyncadd [#allocation4], 0
      %s153 = sshll.u32 [#allocation7], 4
      %s154 = int_to_ptr.vmem [resolvable:$true] %s153
      %s155 = sshll.u32 %s3, 4
      %s156 = int_to_ptr.hbm [resolvable:$true] %s155
      %161 = dma.vmem_to_hbm [thread:$0]  %s154, 256, %s156, [#allocation4], 128, 128, 8
    $region29: #{tpu_custom_call.1} parent=1 // pred_fallthru
      _
    // Predicated region
    $region30: #{tpu_custom_call.1} parent=1 // pred_check
      _
    $region31: #{tpu_custom_call.1} parent=1 // pred_check_branch
      %163 = sbr.rel (0) target = $region33
    $region32: #{tpu_custom_call.1} parent=1 // pred_region
      %165 = dma.done [#allocation4], 256
    $region33: #{tpu_custom_call.1} parent=1 // pred_fallthru
      _
    %166 = vsyncpa [#allocation3], 1
    %167 = vsyncpa [#allocation6], 1
    %168 = vsyncpa [#allocation4], 1

</llo_original>
